<compile_context>
chip_gen: v7x
topology: tpu7x:2x2x1
jax: 0.10.0
libtpu: 0.0.40
codegen_flags: <defaults>
</compile_context>

<pallas_src>
import functools

import jax
import jax.numpy as jnp
from jax.experimental import pallas as pl
from jax.experimental.pallas import tpu as pltpu

LANE = 128


def _round_up(n, m):
    return (n + m - 1) // m * m


# ----------------------------------------------------------------------------
# Kernel
# ----------------------------------------------------------------------------
def hubert_corn_kernel(x_ref, wp_ref, bp_ref, w1_ref, b1_ref, w2_ref, b2_ref,
                       out_ref, acc_ref, *, inv_t, k1):
    """One (batch-tile, time-tile) grid step.

    x_ref  : (TB, TT, H)         f32/bf16  time tile of hubert feats (HBM dtype)
    wp_ref : (H, P_pad)          bf16      projection weight (padded)
    bp_ref : (1, P_pad)          f32       projection bias   (padded)
    w1_ref : (P_pad, K1*HH_pad)  bf16      fused per-threshold hidden weights
    b1_ref : (1, K1*HH_pad)      f32       fused hidden biases
    w2_ref : (1, K1*HH_pad)      f32       packed per-threshold output weights
    b2_ref : (1, OUT)            f32       output biases (padded to 128 lanes)
    out_ref: (TB, OUT)           f32       logits in the first K1 lanes
    acc_ref: (TB, P_pad)         f32       scratch: sum_t relu(x_t @ Wp + bp)
    """
    t = pl.program_id(1)

    @pl.when(t == 0)
    def _():
        acc_ref[...] = jnp.zeros_like(acc_ref)

    tb, tt, h = x_ref.shape
    p_pad = wp_ref.shape[1]

    # bf16 pack happens here (VPU, hidden under the x DMA); x itself streams
    # from HBM in its original dtype — no separate wrapper-side cast pass.
    x = x_ref[...].reshape(tb * tt, h).astype(jnp.bfloat16)
    proj = jnp.dot(x, wp_ref[...], preferred_element_type=jnp.float32)
    proj = jnp.maximum(proj + bp_ref[...], 0.0)              # (TB*TT, P_pad) f32
    # Per-batch partial sum over the time steps of this tile.
    acc_ref[...] += jnp.sum(proj.reshape(tb, tt, p_pad), axis=1)

    # TODO(synk): nn.Dropout is identity at inference; training-mode dropout
    # (pltpu.prng_random_bits masks) is not implemented here.

    @pl.when(t == pl.num_programs(1) - 1)
    def _():
        out_pad = out_ref.shape[-1]
        hh_pad = w1_ref.shape[1] // k1
        feat = acc_ref[...] * inv_t                          # mean over T, f32
        hid = jnp.dot(feat.astype(jnp.bfloat16), w1_ref[...],
                      preferred_element_type=jnp.float32) + b1_ref[...]
        hid = jnp.maximum(hid, 0.0)                          # (TB, K1*HH_pad) f32
        # Per-threshold output layer: VPU multiply + segment sum — no
        # block-diagonal (K1*HH_pad, 128) zero-heavy weight in HBM/VMEM.
        seg = (hid * w2_ref[...]).reshape(tb, k1, hh_pad).sum(axis=-1)  # (TB, K1)
        # Scatter the K1 logits into the first K1 lanes of the padded output
        # so the store stays a single full-width lane-dense vst.
        scatter = jnp.eye(k1, out_pad, dtype=jnp.float32)
        out_ref[...] = (jnp.dot(seg, scatter, preferred_element_type=jnp.float32)
                        + b2_ref[...])


# ----------------------------------------------------------------------------
# Parameter packing (zero-pad to lane-dense shapes, fuse the K1 classifiers)
# ----------------------------------------------------------------------------
def pack_params(params):
    wp, bp, w1, b1, w2, b2 = params
    hubert_dim, proj_dim = wp.shape
    k1, _, hh = w1.shape
    p_pad = _round_up(proj_dim, LANE)
    hh_pad = _round_up(hh, LANE)
    out_pad = _round_up(k1, LANE)

    wp_p = jnp.zeros((hubert_dim, p_pad), jnp.float32).at[:, :proj_dim].set(wp)
    bp_p = jnp.zeros((1, p_pad), jnp.float32).at[:, :proj_dim].set(bp)

    # Fuse the K1 hidden layers into one (P_pad, K1*HH_pad) matrix (bf16).
    w1_p = jnp.zeros((k1, p_pad, hh_pad), jnp.float32)
    w1_p = w1_p.at[:, :proj_dim, :hh].set(w1)
    w1_all = jnp.transpose(w1_p, (1, 0, 2)).reshape(p_pad, k1 * hh_pad)
    b1_all = (jnp.zeros((k1, hh_pad), jnp.float32).at[:, :hh].set(b1)
              ).reshape(1, k1 * hh_pad)

    # Per-threshold output weights packed as one lane-dense row vector; the
    # kernel applies them with a VPU multiply + per-segment reduction.
    w2_vec = (jnp.zeros((k1, hh_pad), jnp.float32).at[:, :hh].set(w2)
              ).reshape(1, k1 * hh_pad)
    b2_p = jnp.zeros((1, out_pad), jnp.float32).at[:, :k1].set(b2)

    return (wp_p.astype(jnp.bfloat16), bp_p, w1_all.astype(jnp.bfloat16),
            b1_all, w2_vec, b2_p)


# ----------------------------------------------------------------------------
# Wrapper
# ----------------------------------------------------------------------------
def hubert_corn_forward(x, params, *, seq_tile=512):
    """x: (B, T, H) float32 or bfloat16 -> logits (B, num_classes - 1) f32."""
    B, T, H = x.shape
    k1 = params[2].shape[0]

    wp_p, bp_p, w1_all, b1_all, w2_vec, b2_p = pack_params(params)
    p_pad = wp_p.shape[1]
    hid_all = w1_all.shape[1]
    out_pad = b2_p.shape[1]

    # --- tiling --------------------------------------------------------------
    # v7x: prefer grid[0] >= 2 so the "parallel" batch axis actually splits
    # across both TensorCores.  The lane-dense out block (tb, 128) requires
    # tb % 8 == 0 or tb == B, so small batches stay in one block.
    # TODO(synk): for B <= 8 on v7x the second core idles; splitting T across
    # cores needs a cross-core partial-sum combine and is not implemented.
    if B > 8 and B % 8 == 0:
        tb = 8
    else:
        tb = B
    assert B % tb == 0 and (tb == B or tb % 8 == 0), \
        "batch must be <= 8 or a multiple of 8"
    tt = min(seq_tile, T)
    assert T % tt == 0, "seq_len must be divisible by the time tile"
    assert tt % 8 == 0, "time tile must be a multiple of 8 (sublane tiling)"
    grid = (B // tb, T // tt)

    # --- VMEM budget (bytes) -------------------------------------------------
    # double-buffered x tile (HBM dtype) + in-kernel bf16 copy of the tile
    # + materialized f32 proj intermediate + single-buffered weights
    # + accumulator scratch + (small, double-buffered) output block.
    x_bytes = x.dtype.itemsize
    budget = (2 * tb * tt * H * x_bytes            # x double buffer
              + tb * tt * H * 2                    # in-kernel bf16 copy of x tile
              + tb * tt * p_pad * 4                # f32 proj intermediate
              + (wp_p.size + w1_all.size) * 2      # bf16 weights, single-buffered
              + (bp_p.size + b1_all.size + w2_vec.size + b2_p.size) * 4
              + tb * p_pad * 4                     # accumulator scratch
              + 2 * tb * out_pad * 4)              # output block
    # Headroom for Mosaic-internal scratch; stays within every generation's
    # physical VMEM (v7x: 64 MiB, v5e/v6e: 128 MiB) for sane tile choices.
    vmem_limit = int(min(max(budget + (8 << 20), 32 << 20), 100 << 20))

    kernel = functools.partial(hubert_corn_kernel, inv_t=float(1.0 / T), k1=k1)

    flops = (2 * B * T * H * p_pad                 # projection
             + 2 * B * p_pad * hid_all             # fused classifier hidden
             + 3 * B * hid_all)                    # VPU w2 multiply + segment sum
    bytes_accessed = (x.size * x_bytes
                      + (wp_p.size + w1_all.size) * 2
                      + 4 * (bp_p.size + b1_all.size + w2_vec.size
                             + b2_p.size + B * out_pad))

    resident = pl.Buffered(1)   # constant-index operands: DMA once, one buffer

    logits_pad = pl.pallas_call(
        kernel,
        out_shape=jax.ShapeDtypeStruct((B, out_pad), jnp.float32),
        grid_spec=pltpu.PrefetchScalarGridSpec(
            num_scalar_prefetch=0,
            grid=grid,
            in_specs=[
                pl.BlockSpec((tb, tt, H), lambda b, t: (b, t, 0)),
                pl.BlockSpec((H, p_pad), lambda b, t: (0, 0),
                             pipeline_mode=resident),
                pl.BlockSpec((1, p_pad), lambda b, t: (0, 0),
                             pipeline_mode=resident),
                pl.BlockSpec((p_pad, hid_all), lambda b, t: (0, 0),
                             pipeline_mode=resident),
                pl.BlockSpec((1, hid_all), lambda b, t: (0, 0),
                             pipeline_mode=resident),
                pl.BlockSpec((1, hid_all), lambda b, t: (0, 0),
                             pipeline_mode=resident),
                pl.BlockSpec((1, out_pad), lambda b, t: (0, 0),
                             pipeline_mode=resident),
            ],
            out_specs=pl.BlockSpec((tb, out_pad), lambda b, t: (b, 0)),
            scratch_shapes=[pltpu.VMEM((tb, p_pad), jnp.float32)],
        ),
        compiler_params=pltpu.CompilerParams(
            dimension_semantics=("parallel", "arbitrary"),
            vmem_limit_bytes=vmem_limit),
        cost_estimate=pl.CostEstimate(
            flops=flops, transcendentals=0, bytes_accessed=bytes_accessed),
    )(x, wp_p, bp_p, w1_all, b1_all, w2_vec, b2_p)

    return logits_pad[:, :k1]


# ----------------------------------------------------------------------------
# Synthetic parameters + plain-JAX reference
# ----------------------------------------------------------------------------
def init_params(key, hubert_dim, proj_dim, num_classes):
    """Deterministic synthetic parameters (shapes match the nn.Module)."""
    k1 = num_classes - 1
    hh = proj_dim // 2
    ks = jax.random.split(key, 6)
    wp = jax.random.normal(ks[0], (hubert_dim, proj_dim), jnp.float32) * 0.05
    bp = jax.random.normal(ks[1], (1, proj_dim), jnp.float32) * 0.05
    w1 = jax.random.normal(ks[2], (k1, proj_dim, hh), jnp.float32) * 0.05
    b1 = jax.random.normal(ks[3], (k1, hh), jnp.float32) * 0.05
    w2 = jax.random.normal(ks[4], (k1, hh), jnp.float32) * 0.05
    b2 = jax.random.normal(ks[5], (1, k1), jnp.float32) * 0.05
    return wp, bp, w1, b1, w2, b2


def reference_forward(x, params):
    """Plain-JAX reference matching the PyTorch module (eval mode)."""
    wp, bp, w1, b1, w2, b2 = params
    feat = jnp.mean(jax.nn.relu(jnp.einsum("bth,hp->btp", x, wp) + bp), axis=1)
    hid = jax.nn.relu(jnp.einsum("bp,kph->kbh", feat, w1) + b1[:, None, :])
    logits = jnp.einsum("kbh,kh->bk", hid, w2) + b2
    return logits


if __name__ == "__main__":
    # Small shapes consistent with the module: batch=2, seq=64,
    # hubert_dim=64, proj_dim=32, num_classes=9 -> logits (2, 8).
    # seq_tile=16 -> grid (1, 4) so the pipelined T accumulation is exercised.
    B, T, H, P, NC = 2, 64, 64, 32, 9

    key = jax.random.PRNGKey(0)
    kx, kp = jax.random.split(key)
    x = jax.random.normal(kx, (B, T, H), jnp.float32)
    params = init_params(kp, H, P, NC)

    logits = jax.block_until_ready(hubert_corn_forward(x, params, seq_tile=16))
    assert logits.shape == (B, NC - 1), logits.shape

    # Reference applies the same bf16 rounding the kernel uses for x, Wp, W1.
    wp, bp, w1, b1, w2, b2 = params
    to_bf16 = lambda a: a.astype(jnp.bfloat16).astype(jnp.float32)
    ref = reference_forward(to_bf16(x),
                            (to_bf16(wp), bp, to_bf16(w1), b1, w2, b2))
    err = jnp.max(jnp.abs(logits - ref))
    assert jnp.allclose(logits, ref, atol=2e-3, rtol=2e-3), f"max abs err {err}"

    # predict() equivalent (glue, outside the kernel):
    pred = jnp.sum(jax.nn.sigmoid(logits) > 0.5, axis=1) + 1
    jax.block_until_ready(pred)

    print("KERNEL_OK")
</pallas_src>

<mosaic_0001>
module attributes {stable_mosaic.version = 11 : i64} {
  func.func @hubert_corn_kernel(%arg0: i32, %arg1: i32, %arg2: memref<2x16x64xf32, #tpu.memory_space<vmem>>, %arg3: memref<64x128xbf16, #tpu.memory_space<vmem>>, %arg4: memref<1x128xf32, #tpu.memory_space<vmem>>, %arg5: memref<128x1024xbf16, #tpu.memory_space<vmem>>, %arg6: memref<1x1024xf32, #tpu.memory_space<vmem>>, %arg7: memref<1x1024xf32, #tpu.memory_space<vmem>>, %arg8: memref<1x128xf32, #tpu.memory_space<vmem>>, %arg9: memref<2x128xf32, #tpu.memory_space<vmem>>, %arg10: memref<2x128xf32, #tpu.memory_space<vmem>>) attributes {dimension_semantics = [#tpu.dimension_semantics<parallel>, #tpu.dimension_semantics<arbitrary>], iteration_bounds = array<i64: 1, 4>, scalar_prefetch = 0 : i64, scratch_operands = 1 : i64, tpu.core_type = #tpu.core_type<tc>, window_params = [{transform_indices = @transform_0, window_bounds = array<i64: 2, 16, 64>}, {pipeline_mode = #tpu.pipeline_mode<synchronous>, transform_indices = @transform_1, window_bounds = array<i64: 64, 128>}, {pipeline_mode = #tpu.pipeline_mode<synchronous>, transform_indices = @transform_2, window_bounds = array<i64: 1, 128>}, {pipeline_mode = #tpu.pipeline_mode<synchronous>, transform_indices = @transform_3, window_bounds = array<i64: 128, 1024>}, {pipeline_mode = #tpu.pipeline_mode<synchronous>, transform_indices = @transform_4, window_bounds = array<i64: 1, 1024>}, {pipeline_mode = #tpu.pipeline_mode<synchronous>, transform_indices = @transform_5, window_bounds = array<i64: 1, 1024>}, {pipeline_mode = #tpu.pipeline_mode<synchronous>, transform_indices = @transform_6, window_bounds = array<i64: 1, 128>}, {transform_indices = @transform_7, window_bounds = array<i64: 2, 128>}]} {
    %c0_i32 = arith.constant 0 : i32
    %0 = arith.cmpi eq, %arg1, %c0_i32 : i32
    %1 = arith.extui %0 : i1 to i32
    %c0_i32_0 = arith.constant 0 : i32
    %2 = arith.cmpi ne, %1, %c0_i32_0 : i32
    scf.if %2 {
      %cst_14 = arith.constant 0.000000e+00 : f32
      %21 = vector.broadcast %cst_14 : f32 to vector<2x128xf32>
      %c0_15 = arith.constant 0 : index
      %c0_16 = arith.constant 0 : index
      %22 = vector.load %arg10[%c0_15, %c0_16] : memref<2x128xf32, #tpu.memory_space<vmem>>, vector<2x128xf32>
      tpu.vector_store %arg10[%c0_15, %c0_16], %21 {strides = array<i32>} : memref<2x128xf32, #tpu.memory_space<vmem>>, vector<2x128xf32>,
    } else {
    }
    %c0 = arith.constant 0 : index
    %c0_1 = arith.constant 0 : index
    %c0_2 = arith.constant 0 : index
    %3 = vector.load %arg2[%c0, %c0_1, %c0_2] : memref<2x16x64xf32, #tpu.memory_space<vmem>>, vector<2x16x64xf32>
    %4 = vector.shape_cast %3 : vector<2x16x64xf32> to vector<32x64xf32>
    %5 = arith.truncf %4 : vector<32x64xf32> to vector<32x64xbf16>
    %c0_3 = arith.constant 0 : index
    %c0_4 = arith.constant 0 : index
    %6 = vector.load %arg3[%c0_3, %c0_4] : memref<64x128xbf16, #tpu.memory_space<vmem>>, vector<64x128xbf16>
    %cst = arith.constant dense<0.000000e+00> : vector<32x128xf32>
    %7 = tpu.matmul %5, %6, %cst {dimension_numbers = #tpu.dot_dimension_numbers<[1], [0], [0], [1], [0, 0, 1, 1], [], []>} : vector<32x64xbf16>, vector<64x128xbf16>, vector<32x128xf32> -> vector<32x128xf32>
    %c0_5 = arith.constant 0 : index
    %c0_6 = arith.constant 0 : index
    %8 = vector.load %arg4[%c0_5, %c0_6] : memref<1x128xf32, #tpu.memory_space<vmem>>, vector<1x128xf32>
    %9 = vector.broadcast %8 : vector<1x128xf32> to vector<32x128xf32>
    %10 = arith.addf %7, %9 : vector<32x128xf32>
    %cst_7 = arith.constant 0.000000e+00 : f32
    %11 = vector.broadcast %cst_7 : f32 to vector<32x128xf32>
    %12 = arith.maximumf %10, %11 : vector<32x128xf32>
    %c0_8 = arith.constant 0 : index
    %c0_9 = arith.constant 0 : index
    %13 = vector.load %arg10[%c0_8, %c0_9] : memref<2x128xf32, #tpu.memory_space<vmem>>, vector<2x128xf32>
    %14 = vector.shape_cast %12 : vector<32x128xf32> to vector<2x16x128xf32>
    %cst_10 = arith.constant dense<0.000000e+00> : vector<2x128xf32>
    %15 = vector.multi_reduction <add>, %14, %cst_10 [1] : vector<2x16x128xf32> to vector<2x128xf32>
    %16 = arith.addf %13, %15 : vector<2x128xf32>
    %c0_11 = arith.constant 0 : index
    %c0_12 = arith.constant 0 : index
    %17 = vector.load %arg10[%c0_11, %c0_12] : memref<2x128xf32, #tpu.memory_space<vmem>>, vector<2x128xf32>
    tpu.vector_store %arg10[%c0_11, %c0_12], %16 {strides = array<i32>} : memref<2x128xf32, #tpu.memory_space<vmem>>, vector<2x128xf32>,
    %c3_i32 = arith.constant 3 : i32
    %18 = arith.cmpi eq, %arg1, %c3_i32 : i32
    %19 = arith.extui %18 : i1 to i32
    %c0_i32_13 = arith.constant 0 : i32
    %20 = arith.cmpi ne, %19, %c0_i32_13 : i32
    scf.if %20 {
      %c0_14 = arith.constant 0 : index
      %c0_15 = arith.constant 0 : index
      %21 = vector.load %arg10[%c0_14, %c0_15] : memref<2x128xf32, #tpu.memory_space<vmem>>, vector<2x128xf32>
      %cst_16 = arith.constant 1.562500e-02 : f32
      %22 = vector.broadcast %cst_16 : f32 to vector<2x128xf32>
      %23 = arith.mulf %21, %22 : vector<2x128xf32>
      %24 = arith.truncf %23 : vector<2x128xf32> to vector<2x128xbf16>
      %c0_17 = arith.constant 0 : index
      %c0_18 = arith.constant 0 : index
      %25 = vector.load %arg5[%c0_17, %c0_18] : memref<128x1024xbf16, #tpu.memory_space<vmem>>, vector<128x1024xbf16>
      %cst_19 = arith.constant dense<0.000000e+00> : vector<2x1024xf32>
      %26 = tpu.matmul %24, %25, %cst_19 {dimension_numbers = #tpu.dot_dimension_numbers<[1], [0], [0], [1], [0, 0, 1, 1], [], []>} : vector<2x128xbf16>, vector<128x1024xbf16>, vector<2x1024xf32> -> vector<2x1024xf32>
      %c0_20 = arith.constant 0 : index
      %c0_21 = arith.constant 0 : index
      %27 = vector.load %arg6[%c0_20, %c0_21] : memref<1x1024xf32, #tpu.memory_space<vmem>>, vector<1x1024xf32>
      %28 = vector.broadcast %27 : vector<1x1024xf32> to vector<2x1024xf32>
      %29 = arith.addf %26, %28 : vector<2x1024xf32>
      %cst_22 = arith.constant 0.000000e+00 : f32
      %30 = vector.broadcast %cst_22 : f32 to vector<2x1024xf32>
      %31 = arith.maximumf %29, %30 : vector<2x1024xf32>
      %c0_23 = arith.constant 0 : index
      %c0_24 = arith.constant 0 : index
      %32 = vector.load %arg7[%c0_23, %c0_24] : memref<1x1024xf32, #tpu.memory_space<vmem>>, vector<1x1024xf32>
      %33 = vector.broadcast %32 : vector<1x1024xf32> to vector<2x1024xf32>
      %34 = arith.mulf %31, %33 : vector<2x1024xf32>
      %35 = vector.shape_cast %34 : vector<2x1024xf32> to vector<2x8x128xf32>
      %cst_25 = arith.constant dense<0.000000e+00> : vector<2x8xf32>
      %36 = vector.multi_reduction <add>, %35, %cst_25 [2] : vector<2x8x128xf32> to vector<2x8xf32>
      %37 = tpu.iota {dimensions = array<i32: 0>} : vector<8x128xi32>
      %38 = tpu.iota {dimensions = array<i32: 1>} : vector<8x128xi32>
      %c0_i32_26 = arith.constant 0 : i32
      %39 = vector.broadcast %c0_i32_26 : i32 to vector<8x128xi32>
      %40 = arith.addi %37, %39 : vector<8x128xi32>
      %41 = arith.cmpi eq, %40, %38 : vector<8x128xi32>
      %42 = arith.extui %41 : vector<8x128xi1> to vector<8x128xi32>
      %43 = arith.sitofp %42 : vector<8x128xi32> to vector<8x128xf32>
      %cst_27 = arith.constant dense<0.000000e+00> : vector<2x128xf32>
      %44 = tpu.matmul %36, %43, %cst_27 {dimension_numbers = #tpu.dot_dimension_numbers<[1], [0], [0], [1], [0, 0, 1, 1], [], []>} : vector<2x8xf32>, vector<8x128xf32>, vector<2x128xf32> -> vector<2x128xf32>
      %c0_28 = arith.constant 0 : index
      %c0_29 = arith.constant 0 : index
      %45 = vector.load %arg8[%c0_28, %c0_29] : memref<1x128xf32, #tpu.memory_space<vmem>>, vector<1x128xf32>
      %46 = vector.broadcast %45 : vector<1x128xf32> to vector<2x128xf32>
      %47 = arith.addf %44, %46 : vector<2x128xf32>
      %c0_30 = arith.constant 0 : index
      %c0_31 = arith.constant 0 : index
      %48 = vector.load %arg9[%c0_30, %c0_31] : memref<2x128xf32, #tpu.memory_space<vmem>>, vector<2x128xf32>
      tpu.vector_store %arg9[%c0_30, %c0_31], %47 {strides = array<i32>} : memref<2x128xf32, #tpu.memory_space<vmem>>, vector<2x128xf32>,
    } else {
    }
    return
  }
  func.func @transform_0(%arg0: i32, %arg1: i32) -> (i32, i32, i32) {
    %c0_i32 = arith.constant 0 : i32
    %c0_i32_0 = arith.constant 0 : i32
    return %arg0, %arg1, %c0_i32 : i32, i32, i32
  }
  func.func @transform_1(%arg0: i32, %arg1: i32) -> (i32, i32) {
    %c0_i32 = arith.constant 0 : i32
    %c0_i32_0 = arith.constant 0 : i32
    %c0_i32_1 = arith.constant 0 : i32
    return %c0_i32, %c0_i32_0 : i32, i32
  }
  func.func @transform_2(%arg0: i32, %arg1: i32) -> (i32, i32) {
    %c0_i32 = arith.constant 0 : i32
    %c0_i32_0 = arith.constant 0 : i32
    %c0_i32_1 = arith.constant 0 : i32
    return %c0_i32, %c0_i32_0 : i32, i32
  }
  func.func @transform_3(%arg0: i32, %arg1: i32) -> (i32, i32) {
    %c0_i32 = arith.constant 0 : i32
    %c0_i32_0 = arith.constant 0 : i32
    %c0_i32_1 = arith.constant 0 : i32
    return %c0_i32, %c0_i32_0 : i32, i32
  }
  func.func @transform_4(%arg0: i32, %arg1: i32) -> (i32, i32) {
    %c0_i32 = arith.constant 0 : i32
    %c0_i32_0 = arith.constant 0 : i32
    %c0_i32_1 = arith.constant 0 : i32
    return %c0_i32, %c0_i32_0 : i32, i32
  }
  func.func @transform_5(%arg0: i32, %arg1: i32) -> (i32, i32) {
    %c0_i32 = arith.constant 0 : i32
    %c0_i32_0 = arith.constant 0 : i32
    %c0_i32_1 = arith.constant 0 : i32
    return %c0_i32, %c0_i32_0 : i32, i32
  }
  func.func @transform_6(%arg0: i32, %arg1: i32) -> (i32, i32) {
    %c0_i32 = arith.constant 0 : i32
    %c0_i32_0 = arith.constant 0 : i32
    %c0_i32_1 = arith.constant 0 : i32
    return %c0_i32, %c0_i32_0 : i32, i32
  }
  func.func @transform_7(%arg0: i32, %arg1: i32) -> (i32, i32) {
    %c0_i32 = arith.constant 0 : i32
    %c0_i32_0 = arith.constant 0 : i32
    return %arg0, %c0_i32 : i32, i32
  }
}

</mosaic_0001>

<llo_original>
// kernel: tpu_custom_call.1
$region0: #{tpu_custom_call.1}
  #allocation0 [shape = 'u32[]', space=smem, size = 0x4, offset = 0x4, fixed_abs, tag = 'smem constant byte address 0x4 - core index']
  #allocation1 [shape = 'u32[144,128]{1,0:T(1,128)}', space=vmem, size = 0x12000, scoped, tag = 'internal scratch']
  #allocation2 [shape = 'f32[2,128]{1,0:T(2,128)}', space=vmem, size = 0x400, scoped, tag = 'scratch operand']
  #allocation10 [shape = 's32[]', space=sflag, size = 0x4, offset = 0, fixed_abs, tag = 'sflag constant byte address 0x0 - dummy sync flag']
  %s0 = inlined_call_operand.hbm [shape: f32[2,64,64], index: 0, kind: input, shape index: {}]
  %s1 = inlined_call_operand.hbm [shape: bf16[64,128], index: 1, kind: input, shape index: {}]
  %s2 = inlined_call_operand.vmem [shape: f32[1,128], index: 2, kind: input, shape index: {}]
  %s3 = inlined_call_operand.hbm [shape: bf16[128,1024], index: 3, kind: input, shape index: {}]
  %s4 = inlined_call_operand.vmem [shape: f32[1,1024], index: 4, kind: input, shape index: {}]
  %s5 = inlined_call_operand.vmem [shape: f32[1,1024], index: 5, kind: input, shape index: {}]
  %s6 = inlined_call_operand.vmem [shape: f32[1,128], index: 6, kind: input, shape index: {}]
  %s7 = inlined_call_operand.hbm [shape: f32[2,128], index: 7, kind: output, shape index: {}]
  %s8 = sld [smem:[#allocation0]]
  $region81: #{tpu_custom_call.1} parent=0
    _
  %s10 = ssub.s32 1, %s8
  %s11 = scalar_select 0, %s10, %s8
  $region1: #{tpu_custom_call.1} parent=0
    #allocation3 [shape = 'u8[32768]{0}', space=vmem, size = 0x8000, scoped, tag = 'input window, operand 0']
    #allocation4 [shape = 's32[2]{0}', space=sflag, size = 0x8, scoped, tag = 'scoped memory for tpu_custom_call.1']
    #allocation5 [shape = 's32[2]{0}', space=sflag, size = 0x8, scoped, tag = 'scoped memory for tpu_custom_call.1']
    #allocation6 [shape = 'u8[16384]{0}', space=vmem, size = 0x4000, scoped, tag = 'input window, operand 1, single buffered']
    #allocation7 [shape = 's32[1]{0}', space=sflag, size = 0x4, scoped, tag = 'scoped memory for tpu_custom_call.1']
    #allocation8 [shape = 'u8[262144]{0}', space=vmem, size = 0x40000, scoped, tag = 'input window, operand 3, single buffered']
    #allocation9 [shape = 'u8[1024]{0}', space=vmem, size = 0x400, scoped, tag = 'output window, operand 0, single buffered']
    %12 = vsyncpa [#allocation4], 0
    %s13 = scalar_lea.sflag [#allocation4], 1
    %14 = vsyncpa %s13, 0
    %15 = vsyncpa [#allocation7], 0
    %16 = vsyncpa [#allocation5], 0
    loop: start=0, step=1, limit=6
    $region2: #{tpu_custom_call.1} parent=1 // loop_pre_header
      _
    $region3: #{tpu_custom_call.1} parent=1 // loop_header
      %s18 = sphi 0, %s22
      %p19 = scmp.ge.s32.totalorder %s18, 6
      %s25 = sphi 0, %s37
      %s26 = sphi 0, %s33
      %s27 = sphi 0, %s25
      %s28 = sphi 0, %s26
      %s29 = sphi 0, %s27
      %s30 = sphi 0, %s28
      %s42 = sphi 0, %s44
      %s45 = sphi 0, %s42
      %s46 = sphi 0, %s45
      %s62 = sphi 0, %s46
      %s66 = sphi 0, %s66
      %s68 = sphi 0, %s66
      %s69 = sphi 0, %s68
      %s83 = sphi 0, %s69
      %s87 = sphi 0, %s87
      %s89 = sphi 0, %s87
      %s90 = sphi 0, %s89
      %s104 = sphi 0, %s90
      %s108 = sphi 0, %s108
      %s110 = sphi 0, %s108
      %s111 = sphi 0, %s110
      %s125 = sphi 0, %s111
      %s129 = sphi 0, %s129
      %s131 = sphi 0, %s129
      %s132 = sphi 0, %s131
      %s146 = sphi 0, %s132
      %s150 = sphi 0, %s150
      %s152 = sphi 0, %s150
      %s153 = sphi 0, %s152
      %s167 = sphi 0, %s153
      %s171 = sphi 0, %s171
      %s173 = sphi 0, %s171
      %s174 = sphi 0, %s173
      %s188 = sphi 0, %s174
      %s194 = sphi 0, %s196
      %s197 = sphi 0, %s194
      %s198 = sphi 0, %s197
      %s214 = sphi 0, %s198
    $region4: #{tpu_custom_call.1} parent=1 // loop_header_branch
      %21 = sbr.rel (%p19) target = $region8
    $region5: #{tpu_custom_call.1} parent=1 // loop_body
      %s23 = ssub.s32 %s18, 1
      %s24 = ssub.s32 %s18, 2
      %s31 = sadd.s32 1, %s26
      %p32 = scmp.ge.s32.totalorder %s31, 4
      %s33 = scalar_select %p32, 0, %s31
      %s34 = sadd.s32 1, %s25
      %s35 = scalar_select %p32, %s34, %s25
      %p36 = scmp.ge.s32.totalorder %s35, 1
      %s37 = scalar_select %p36, 0, %s35
      %s38 = ssub.s32 %s25, %s37
      %s39 = ssub.s32 %s26, %s33
      %s40 = sor.u32 %s38, %s39
      %p41 = scmp.eq.s32.totalorder %s40, 0
      %s43 = sadd.s32 %s42, 1
      %s44 = scalar_select %p41, %s42, %s43
      %p47 = pneg %p41
      %p48 = scmp.eq.s32.totalorder %s18, 3
      %p49 = por %p47, %p48
      %p50 = scmp.ne.s32.totalorder %s42, %s45
      %p51 = scmp.eq.s32.totalorder %s18, 0
      %p52 = por %p50, %p51
      %p53 = scmp.ne.s32.totalorder %s42, %s45
      %p54 = scmp.eq.s32.totalorder %s23, 3
      %p55 = por %p53, %p54
      %p56 = scmp.ne.s32.totalorder %s45, %s46
      %p57 = scmp.eq.s32.totalorder %s23, 0
      %p58 = por %p56, %p57
      %p59 = scmp.ne.s32.totalorder %s45, %s46
      %p60 = scmp.eq.s32.totalorder %s24, 3
      %p61 = por %p59, %p60
      %p63 = scmp.ne.s32.totalorder %s46, %s62
      %p64 = scmp.eq.s32.totalorder %s24, 0
      %p65 = por %p63, %p64
      %s67 = sadd.s32 %s66, 1
      %p70 = scmp.eq.s32.totalorder %s18, 3
      %p71 = scmp.ne.s32.totalorder %s66, %s68
      %p72 = scmp.eq.s32.totalorder %s18, 0
      %p73 = por %p71, %p72
      %p74 = scmp.ne.s32.totalorder %s66, %s68
      %p75 = scmp.eq.s32.totalorder %s23, 3
      %p76 = por %p74, %p75
      %p77 = scmp.ne.s32.totalorder %s68, %s69
      %p78 = scmp.eq.s32.totalorder %s23, 0
      %p79 = por %p77, %p78
      %p80 = scmp.ne.s32.totalorder %s68, %s69
      %p81 = scmp.eq.s32.totalorder %s24, 3
      %p82 = por %p80, %p81
      %p84 = scmp.ne.s32.totalorder %s69, %s83
      %p85 = scmp.eq.s32.totalorder %s24, 0
      %p86 = por %p84, %p85
      %s88 = sadd.s32 %s87, 1
      %p91 = scmp.eq.s32.totalorder %s18, 3
      %p92 = scmp.ne.s32.totalorder %s87, %s89
      %p93 = scmp.eq.s32.totalorder %s18, 0
      %p94 = por %p92, %p93
      %p95 = scmp.ne.s32.totalorder %s87, %s89
      %p96 = scmp.eq.s32.totalorder %s23, 3
      %p97 = por %p95, %p96
      %p98 = scmp.ne.s32.totalorder %s89, %s90
      %p99 = scmp.eq.s32.totalorder %s23, 0
      %p100 = por %p98, %p99
      %p101 = scmp.ne.s32.totalorder %s89, %s90
      %p102 = scmp.eq.s32.totalorder %s24, 3
      %p103 = por %p101, %p102
      %p105 = scmp.ne.s32.totalorder %s90, %s104
      %p106 = scmp.eq.s32.totalorder %s24, 0
      %p107 = por %p105, %p106
      %s109 = sadd.s32 %s108, 1
      %p112 = scmp.eq.s32.totalorder %s18, 3
      %p113 = scmp.ne.s32.totalorder %s108, %s110
      %p114 = scmp.eq.s32.totalorder %s18, 0
      %p115 = por %p113, %p114
      %p116 = scmp.ne.s32.totalorder %s108, %s110
      %p117 = scmp.eq.s32.totalorder %s23, 3
      %p118 = por %p116, %p117
      %p119 = scmp.ne.s32.totalorder %s110, %s111
      %p120 = scmp.eq.s32.totalorder %s23, 0
      %p121 = por %p119, %p120
      %p122 = scmp.ne.s32.totalorder %s110, %s111
      %p123 = scmp.eq.s32.totalorder %s24, 3
      %p124 = por %p122, %p123
      %p126 = scmp.ne.s32.totalorder %s111, %s125
      %p127 = scmp.eq.s32.totalorder %s24, 0
      %p128 = por %p126, %p127
      %s130 = sadd.s32 %s129, 1
      %p133 = scmp.eq.s32.totalorder %s18, 3
      %p134 = scmp.ne.s32.totalorder %s129, %s131
      %p135 = scmp.eq.s32.totalorder %s18, 0
      %p136 = por %p134, %p135
      %p137 = scmp.ne.s32.totalorder %s129, %s131
      %p138 = scmp.eq.s32.totalorder %s23, 3
      %p139 = por %p137, %p138
      %p140 = scmp.ne.s32.totalorder %s131, %s132
      %p141 = scmp.eq.s32.totalorder %s23, 0
      %p142 = por %p140, %p141
      %p143 = scmp.ne.s32.totalorder %s131, %s132
      %p144 = scmp.eq.s32.totalorder %s24, 3
      %p145 = por %p143, %p144
      %p147 = scmp.ne.s32.totalorder %s132, %s146
      %p148 = scmp.eq.s32.totalorder %s24, 0
      %p149 = por %p147, %p148
      %s151 = sadd.s32 %s150, 1
      %p154 = scmp.eq.s32.totalorder %s18, 3
      %p155 = scmp.ne.s32.totalorder %s150, %s152
      %p156 = scmp.eq.s32.totalorder %s18, 0
      %p157 = por %p155, %p156
      %p158 = scmp.ne.s32.totalorder %s150, %s152
      %p159 = scmp.eq.s32.totalorder %s23, 3
      %p160 = por %p158, %p159
      %p161 = scmp.ne.s32.totalorder %s152, %s153
      %p162 = scmp.eq.s32.totalorder %s23, 0
      %p163 = por %p161, %p162
      %p164 = scmp.ne.s32.totalorder %s152, %s153
      %p165 = scmp.eq.s32.totalorder %s24, 3
      %p166 = por %p164, %p165
      %p168 = scmp.ne.s32.totalorder %s153, %s167
      %p169 = scmp.eq.s32.totalorder %s24, 0
      %p170 = por %p168, %p169
      %s172 = sadd.s32 %s171, 1
      %p175 = scmp.eq.s32.totalorder %s18, 3
      %p176 = scmp.ne.s32.totalorder %s171, %s173
      %p177 = scmp.eq.s32.totalorder %s18, 0
      %p178 = por %p176, %p177
      %p179 = scmp.ne.s32.totalorder %s171, %s173
      %p180 = scmp.eq.s32.totalorder %s23, 3
      %p181 = por %p179, %p180
      %p182 = scmp.ne.s32.totalorder %s173, %s174
      %p183 = scmp.eq.s32.totalorder %s23, 0
      %p184 = por %p182, %p183
      %p185 = scmp.ne.s32.totalorder %s173, %s174
      %p186 = scmp.eq.s32.totalorder %s24, 3
      %p187 = por %p185, %p186
      %p189 = scmp.ne.s32.totalorder %s174, %s188
      %p190 = scmp.eq.s32.totalorder %s24, 0
      %p191 = por %p189, %p190
      %s192 = ssub.s32 %s25, %s37
      %p193 = scmp.eq.s32.totalorder %s192, 0
      %s195 = sadd.s32 %s194, 1
      %s196 = scalar_select %p193, %s194, %s195
      %p199 = pneg %p193
      %p200 = scmp.eq.s32.totalorder %s18, 3
      %p201 = por %p199, %p200
      %p202 = scmp.ne.s32.totalorder %s194, %s197
      %p203 = scmp.eq.s32.totalorder %s18, 0
      %p204 = por %p202, %p203
      %p205 = scmp.ne.s32.totalorder %s194, %s197
      %p206 = scmp.eq.s32.totalorder %s23, 3
      %p207 = por %p205, %p206
      %p208 = scmp.ne.s32.totalorder %s197, %s198
      %p209 = scmp.eq.s32.totalorder %s23, 0
      %p210 = por %p208, %p209
      %p211 = scmp.ne.s32.totalorder %s197, %s198
      %p212 = scmp.eq.s32.totalorder %s24, 3
      %p213 = por %p211, %p212
      %p215 = scmp.ne.s32.totalorder %s198, %s214
      %p216 = scmp.eq.s32.totalorder %s24, 0
      %p217 = por %p215, %p216
      %p218 = scmp.le.s32.totalorder 1, %s18
      %p219 = scmp.lt.s32.totalorder %s18, 5
      %p220 = pnand %p218, %p219
      %p221 = pneg %p220
      // Predicated region
      $region9: #{tpu_custom_call.1} parent=5 // pred_check
        _
      $region10: #{tpu_custom_call.1} parent=5 // pred_check_branch
        %223 = sbr.rel (%p220) target = $region12
      $region11: #{tpu_custom_call.1} parent=5 // pred_region
        %s224 = ssub.s32 %s18, 1
        // Predicated region
        $region13: #{tpu_custom_call.1} parent=11 // pred_check
          %p225 = pneg %p79
        $region14: #{tpu_custom_call.1} parent=11 // pred_check_branch
          %227 = sbr.rel (%p225) target = $region16
        $region15: #{tpu_custom_call.1} parent=11 // pred_region
          %s229 = ssub.s32 512, 512
          %230 = vsyncadd [#allocation7], %s229
          %s231 = sshll.u32 [#allocation6], 4
          %s232 = int_to_ptr.vmem [resolvable:$true] %s231
          %237 = dma.hbm_to_vmem [thread:$0]  %s1, 512, %s232, [#allocation7], 64, 64, 4
        $region16: #{tpu_custom_call.1} parent=11 // pred_fallthru
          _
        // Predicated region
        $region17: #{tpu_custom_call.1} parent=11 // pred_check
          %p238 = pneg %p100
        $region18: #{tpu_custom_call.1} parent=11 // pred_check_branch
          %240 = sbr.rel (%p238) target = $region20
        $region19: #{tpu_custom_call.1} parent=11 // pred_region
          _
        $region20: #{tpu_custom_call.1} parent=11 // pred_fallthru
          _
        // Predicated region
        $region21: #{tpu_custom_call.1} parent=11 // pred_check
          %p241 = pneg %p121
        $region22: #{tpu_custom_call.1} parent=11 // pred_check_branch
          %243 = sbr.rel (%p241) target = $region24
        $region23: #{tpu_custom_call.1} parent=11 // pred_region
          %s245 = ssub.s32 8192, 8192
          %246 = vsyncadd [#allocation7], %s245
          %s247 = sshll.u32 [#allocation8], 4
          %s248 = int_to_ptr.vmem [resolvable:$true] %s247
          %253 = dma.hbm_to_vmem [thread:$0]  %s3, 8192, %s248, [#allocation7], 512, 512, 32
        $region24: #{tpu_custom_call.1} parent=11 // pred_fallthru
          _
        // Predicated region
        $region25: #{tpu_custom_call.1} parent=11 // pred_check
          %p254 = pneg %p142
        $region26: #{tpu_custom_call.1} parent=11 // pred_check_branch
          %256 = sbr.rel (%p254) target = $region28
        $region27: #{tpu_custom_call.1} parent=11 // pred_region
          _
        $region28: #{tpu_custom_call.1} parent=11 // pred_fallthru
          _
        // Predicated region
        $region29: #{tpu_custom_call.1} parent=11 // pred_check
          %p257 = pneg %p163
        $region30: #{tpu_custom_call.1} parent=11 // pred_check_branch
          %259 = sbr.rel (%p257) target = $region32
        $region31: #{tpu_custom_call.1} parent=11 // pred_region
          _
        $region32: #{tpu_custom_call.1} parent=11 // pred_fallthru
          _
        // Predicated region
        $region33: #{tpu_custom_call.1} parent=11 // pred_check
          %p260 = pneg %p184
        $region34: #{tpu_custom_call.1} parent=11 // pred_check_branch
          %262 = sbr.rel (%p260) target = $region36
        $region35: #{tpu_custom_call.1} parent=11 // pred_region
          _
        $region36: #{tpu_custom_call.1} parent=11 // pred_fallthru
          _
      $region12: #{tpu_custom_call.1} parent=5 // pred_fallthru
        _
      %p263 = scmp.lt.s32.totalorder %s18, 4
      // Predicated region
      $region37: #{tpu_custom_call.1} parent=5 // pred_check
        %p264 = pneg %p263
      $region38: #{tpu_custom_call.1} parent=5 // pred_check_branch
        %266 = sbr.rel (%p264) target = $region40
      $region39: #{tpu_custom_call.1} parent=5 // pred_region
        // Predicated region
        $region41: #{tpu_custom_call.1} parent=39 // pred_check
          %p267 = pneg %p52
        $region42: #{tpu_custom_call.1} parent=39 // pred_check_branch
          %269 = sbr.rel (%p267) target = $region44
        $region43: #{tpu_custom_call.1} parent=39 // pred_region
          #allocation11 [shape = 'u32[6]{0}', space=smem, size = 0x18, scoped, tag = 'DMA stride descriptor']
          %s270 = sand.u32 %s42, 1
          %s271 = scalar_lea.sflag [#allocation4], %s270
          %s272 = sand.u32 %s42, 1
          %s273 = smul.addr %s272, 32
          %s274 = scalar_lea.vmem [#allocation3], %s273
          %s275 = smul.u32 2, %s25
          %s276 = smul.u32 2, %s26
          %s278 = ssub.s32 512, 512
          %279 = vsyncadd %s271, %s278
          %s280 = smul.addr %s275, 8
          %s281 = sadd.s32 %s276, %s280
          %s282 = smul.addr %s281, 128
          %s283 = scalar_lea.hbm %s0, %s282
          %s285 = sshll.u32 1, 14
          %s286 = sxor.u32 4294967295, %s285
          %s288 = sld [smem:[#allocation0]]
          %s289 = sadd.s32 2, %s288
          %s291 = sshll.u32 7, 26
          %s292 = sxor.u32 4294967295, %s291
          %s293 = sand.u32 0, %s292
          %s294 = sshll.u32 %s289, 26
          %s295 = sor.u32 %s293, %s294
          %s296 = sshll.u32 %s274, 4
          %s297 = int_to_ptr.vmem [resolvable:$true] %s296
          %303 = sst [smem:[#allocation11]] 1024
          %s304 = scalar_lea.smem [#allocation11], 1
          %305 = sst [smem:[%s304]] 256
          %s306 = scalar_lea.smem [#allocation11], 2
          %307 = sst [smem:[%s306]] 2
          %s308 = scalar_lea.smem [#allocation11], 3
          %309 = sst [smem:[%s308]] 128
          %s310 = scalar_lea.smem [#allocation11], 4
          %311 = sst [smem:[%s310]] 128
          %s312 = scalar_lea.smem [#allocation11], 5
          %313 = sst [smem:[%s312]] 8
          %315 = dma.general %s283, 512, %s297, %s271, [#allocation10], [#allocation11], %s295, 0
        $region44: #{tpu_custom_call.1} parent=39 // pred_fallthru
          _
      $region40: #{tpu_custom_call.1} parent=5 // pred_fallthru
        _
      %p316 = scmp.le.s32.totalorder 1, %s18
      %p317 = scmp.lt.s32.totalorder %s18, 5
      %p318 = pnand %p316, %p317
      %p319 = pneg %p318
      // Predicated region
      $region45: #{tpu_custom_call.1} parent=5 // pred_check
        _
      $region46: #{tpu_custom_call.1} parent=5 // pred_check_branch
        %321 = sbr.rel (%p318) target = $region48
      $region47: #{tpu_custom_call.1} parent=5 // pred_region
        %s322 = ssub.s32 %s18, 1
        %s323 = sand.u32 %s45, 1
        %s324 = scalar_lea.sflag [#allocation4], %s323
        %s325 = sand.u32 %s45, 1
        %s326 = smul.addr %s325, 32
        %s327 = scalar_lea.vmem [#allocation3], %s326
        // Predicated region
        $region49: #{tpu_custom_call.1} parent=47 // pred_check
          %p328 = pneg %p58
        $region50: #{tpu_custom_call.1} parent=47 // pred_check_branch
          %330 = sbr.rel (%p328) target = $region52
        $region51: #{tpu_custom_call.1} parent=47 // pred_region
          %331 = dma.done %s324, 512
        $region52: #{tpu_custom_call.1} parent=47 // pred_fallthru
          _
        // Predicated region
        $region53: #{tpu_custom_call.1} parent=47 // pred_check
          %p332 = pneg %p79
        $region54: #{tpu_custom_call.1} parent=47 // pred_check_branch
          %334 = sbr.rel (%p332) target = $region56
        $region55: #{tpu_custom_call.1} parent=47 // pred_region
          %335 = dma.done [#allocation7], 512
        $region56: #{tpu_custom_call.1} parent=47 // pred_fallthru
          _
        // Predicated region
        $region57: #{tpu_custom_call.1} parent=47 // pred_check
          %p336 = pneg %p121
        $region58: #{tpu_custom_call.1} parent=47 // pred_check_branch
          %338 = sbr.rel (%p336) target = $region60
        $region59: #{tpu_custom_call.1} parent=47 // pred_region
          %339 = dma.done [#allocation7], 8192
        $region60: #{tpu_custom_call.1} parent=47 // pred_fallthru
          _
        %s340 = sand.u32 %s45, 1
        %s341 = scalar_lea.sflag [#allocation4], %s340
        %s342 = sand.u32 %s45, 1
        %s343 = smul.addr %s342, 32
        %s344 = scalar_lea.vmem [#allocation3], %s343
        %p345 = pneg %p58
        %p346 = pneg %p55
        %p347 = pneg %p79
        %p348 = pneg %p76
        %p349 = pneg %p100
        %p350 = pneg %p97
        %p351 = pneg %p121
        %p352 = pneg %p118
        %p353 = pneg %p142
        %p354 = pneg %p139
        %p355 = pneg %p163
        %p356 = pneg %p160
        %p357 = pneg %p184
        %p358 = pneg %p181
        %p359 = pneg %p210
        %p360 = pneg %p207
        %s361 = smul.u32 2, %s27
        %s362 = smul.u32 2, %s28
        %p364 = scmp.eq.s32.totalorder %s28, 0
        // Predicated region
        $region61: #{tpu_custom_call.1} parent=47 // pred_check
          %p365 = pneg %p364
        $region62: #{tpu_custom_call.1} parent=47 // pred_check_branch
          %367 = sbr.rel (%p365) target = $region64
        $region63: #{tpu_custom_call.1} parent=47 // pred_region
          %368 = vst [vmem:[#allocation2] sm:$0x3] 0.0
        $region64: #{tpu_custom_call.1} parent=47 // pred_fallthru
          _
        %v369 = vld [vmem:[%s327] sm:$0xff]
        %v370 = vld [vmem:[%s327 + $0x8] sm:$0xff]
        %v371 = vld [vmem:[%s327 + $0x10] sm:$0xff]
        %v372 = vld [vmem:[%s327 + $0x18] sm:$0xff]
        %v373 = vpack.c.bf16 %v370, %v369
        %v374 = vpack.c.bf16 %v372, %v371
        %v375 = vld [vmem:[#allocation6] sm:$0xf]
        %v376 = vld [vmem:[#allocation6 + $0x4] sm:$0xf]
        %v377 = vld [vmem:[#allocation6 + $0x8] sm:$0xf]
        %v378 = vld [vmem:[#allocation6 + $0xc] sm:$0xf]
        %v379 = vld [vmem:[#allocation6 + $0x10] sm:$0xf]
        %v380 = vld [vmem:[#allocation6 + $0x14] sm:$0xf]
        %v381 = vld [vmem:[#allocation6 + $0x18] sm:$0xf]
        %v382 = vld [vmem:[#allocation6 + $0x1c] sm:$0xf]
        %v383 = vld [vmem:[%s2] sm:$0x1]
        %v385 = vlaneseq
        %v386 = vshrl.u32 %v385, 7
        %v387 = vsub.s32 0, %v386
        %v388 = vrot.slane %v383, %v387
        %v398 = vunpack.c.l.b16 %v375
        %v399 = vunpack.c.l.b16 %v376
        %v400 = vunpack.c.l.b16 %v377
        %v401 = vunpack.c.l.b16 %v378
        %v402 = vunpack.c.l.b16 %v379
        %v403 = vunpack.c.l.b16 %v380
        %v404 = vunpack.c.l.b16 %v381
        %v405 = vunpack.c.l.b16 %v382
        %v406 = vpack.c.b16 %v399, %v398
        %v407 = vpack.c.b16 %v401, %v400
        %v408 = vpack.c.b16 %v403, %v402
        %v409 = vpack.c.b16 %v405, %v404
        %vm414 = vcmask 523264
        %v416 = vsel %vm414, %v373, 0
        %v419 = vsel %vm414, %v374, 0
        %421 = vmatprep.subr.bf16.mxu0 0
        %422 = vmatpush1.bf16.msra.mxu0 %v406
        %423 = vmatprep.subr.bf16.mxu0 0
        %424 = vmatpush1.bf16.msra.mxu0 %v407
        %425 = vmatprep.subr.bf16.mxu0 0
        %426 = vmatpush1.bf16.msra.mxu0 %v408
        %427 = vmatprep.subr.bf16.mxu0 0
        %428 = vmatpush1.bf16.msra.mxu0 %v409
        %429 = vmatprep.subr.bf16.mxu0 0
        %430 = vmatpush1.bf16.msra.mxu0 0
        %431 = vmatprep.subr.bf16.mxu0 0
        %432 = vmatpush1.bf16.msra.mxu0 0
        %433 = vmatprep.subr.bf16.mxu0 0
        %434 = vmatpush1.bf16.msra.mxu0 0
        %435 = vmatprep.subr.bf16.mxu0 0
        %436 = vmatpush1.bf16.msra.mxu0 0
        %437 = vmatprep.subr.bf16.mxu0 0
        %438 = vmatpush1.bf16.msra.mxu0 0
        %439 = vmatprep.subr.bf16.mxu0 0
        %440 = vmatpush1.bf16.msra.mxu0 0
        %441 = vmatprep.subr.bf16.mxu0 0
        %442 = vmatpush1.bf16.msra.mxu0 0
        %443 = vmatprep.subr.bf16.mxu0 0
        %444 = vmatpush1.bf16.msra.mxu0 0
        %445 = vmatprep.subr.bf16.mxu0 0
        %446 = vmatpush1.bf16.msra.mxu0 0
        %447 = vmatprep.subr.bf16.mxu0 0
        %448 = vmatpush1.bf16.msra.mxu0 0
        %449 = vmatprep.subr.bf16.mxu0 0
        %450 = vmatpush1.bf16.msra.mxu0 0
        %451 = vmatprep.subr.bf16.mxu0 0
        %452 = vmatpush1.bf16.msra.mxu0 0
        %453 = vmatprep.mubr.bf16.mxu0 0
        %454 = vmatmul.mubr.bf16.gmra.mrb[0].mxu0 %v416
        %v455 = vpop.f32.mrb[0].mxu0
        %v456 = vadd.f32 %v388, %v455
        %v457 = vpop.f32.mrb[0].mxu0
        %v458 = vpop.f32.mrb[0].mxu0
        %v459 = vadd.f32 %v388, %v458
        %v460 = vpop.f32.mrb[0].mxu0
        %461 = vmatprep.mubr.bf16.mxu0 0
        %462 = vmatmul.mubr.bf16.gmra.mrb[0].mxu0 %v419
        %v463 = vpop.f32.mrb[0].mxu0
        %v464 = vadd.f32 %v388, %v463
        %v465 = vpop.f32.mrb[0].mxu0
        %v466 = vpop.f32.mrb[0].mxu0
        %v467 = vadd.f32 %v388, %v466
        %v468 = vpop.f32.mrb[0].mxu0
        %469 = vdwg.mxu0
        %v470 = vmax.f32 %v456, 0.0
        %v471 = vmax.f32 %v459, 0.0
        %v472 = vmax.f32 %v464, 0.0
        %v473 = vmax.f32 %v467, 0.0
        %v474 = vld [vmem:[#allocation2] sm:$0x3]
        %v475 = vadd.f32 %v470, %v471
        %v476 = vrot.slane %v475, 4
        %v477 = vadd.f32 %v475, %v476
        %v478 = vrot.slane %v477, 2
        %v479 = vadd.f32 %v477, %v478
        %v480 = vrot.slane %v479, 1
        %v481 = vadd.f32 %v479, %v480
        %v482 = vadd.f32 %v472, %v473
        %v483 = vrot.slane %v482, 4
        %v484 = vadd.f32 %v482, %v483
        %v485 = vrot.slane %v484, 2
        %v486 = vadd.f32 %v484, %v485
        %v487 = vrot.slane %v486, 1
        %v488 = vadd.f32 %v486, %v487
        %vm491 = vcmask 1041409
        %v492 = vsel %vm491, %v488, %v481
        %v494 = vadd.f32 %v474, %v492
        %495 = vst [vmem:[#allocation2] sm:$0x3] %v494
        %p496 = scmp.eq.s32.totalorder %s28, 3
        // Predicated region
        $region65: #{tpu_custom_call.1} parent=47 // pred_check
          %p497 = pneg %p496
        $region66: #{tpu_custom_call.1} parent=47 // pred_check_branch
          %499 = sbr.rel (%p497) target = $region68
        $region67: #{tpu_custom_call.1} parent=47 // pred_region
          %v500 = vld [vmem:[#allocation2] sm:$0x3]
          %v501 = vmul.f32 %v500, 0.015625
          %v502 = vpack.c.bf16 %v501, %v501
          %v503 = vld [vmem:[#allocation8] sm:$0xff]
          %v504 = vld [vmem:[#allocation8 + $0x8] sm:$0xff]
          %v505 = vld [vmem:[#allocation8 + $0x10] sm:$0xff]
          %v506 = vld [vmem:[#allocation8 + $0x18] sm:$0xff]
          %v507 = vld [vmem:[#allocation8 + $0x20] sm:$0xff]
          %v508 = vld [vmem:[#allocation8 + $0x28] sm:$0xff]
          %v509 = vld [vmem:[#allocation8 + $0x30] sm:$0xff]
          %v510 = vld [vmem:[#allocation8 + $0x38] sm:$0xff]
          %v511 = vld [vmem:[#allocation8 + $0x40] sm:$0xff]
          %v512 = vld [vmem:[#allocation8 + $0x48] sm:$0xff]
          %v513 = vld [vmem:[#allocation8 + $0x50] sm:$0xff]
          %v514 = vld [vmem:[#allocation8 + $0x58] sm:$0xff]
          %v515 = vld [vmem:[#allocation8 + $0x60] sm:$0xff]
          %v516 = vld [vmem:[#allocation8 + $0x68] sm:$0xff]
          %v517 = vld [vmem:[#allocation8 + $0x70] sm:$0xff]
          %v518 = vld [vmem:[#allocation8 + $0x78] sm:$0xff]
          %v519 = vld [vmem:[#allocation8 + $0x80] sm:$0xff]
          %v520 = vld [vmem:[#allocation8 + $0x88] sm:$0xff]
          %v521 = vld [vmem:[#allocation8 + $0x90] sm:$0xff]
          %v522 = vld [vmem:[#allocation8 + $0x98] sm:$0xff]
          %v523 = vld [vmem:[#allocation8 + $0xa0] sm:$0xff]
          %v524 = vld [vmem:[#allocation8 + $0xa8] sm:$0xff]
          %v525 = vld [vmem:[#allocation8 + $0xb0] sm:$0xff]
          %v526 = vld [vmem:[#allocation8 + $0xb8] sm:$0xff]
          %v527 = vld [vmem:[#allocation8 + $0xc0] sm:$0xff]
          %v528 = vld [vmem:[#allocation8 + $0xc8] sm:$0xff]
          %v529 = vld [vmem:[#allocation8 + $0xd0] sm:$0xff]
          %v530 = vld [vmem:[#allocation8 + $0xd8] sm:$0xff]
          %v531 = vld [vmem:[#allocation8 + $0xe0] sm:$0xff]
          %v532 = vld [vmem:[#allocation8 + $0xe8] sm:$0xff]
          %v533 = vld [vmem:[#allocation8 + $0xf0] sm:$0xff]
          %v534 = vld [vmem:[#allocation8 + $0xf8] sm:$0xff]
          %v535 = vld [vmem:[#allocation8 + $0x100] sm:$0xff]
          %v536 = vld [vmem:[#allocation8 + $0x108] sm:$0xff]
          %v537 = vld [vmem:[#allocation8 + $0x110] sm:$0xff]
          %v538 = vld [vmem:[#allocation8 + $0x118] sm:$0xff]
          %v539 = vld [vmem:[#allocation8 + $0x120] sm:$0xff]
          %v540 = vld [vmem:[#allocation8 + $0x128] sm:$0xff]
          %v541 = vld [vmem:[#allocation8 + $0x130] sm:$0xff]
          %v542 = vld [vmem:[#allocation8 + $0x138] sm:$0xff]
          %v543 = vld [vmem:[#allocation8 + $0x140] sm:$0xff]
          %v544 = vld [vmem:[#allocation8 + $0x148] sm:$0xff]
          %v545 = vld [vmem:[#allocation8 + $0x150] sm:$0xff]
          %v546 = vld [vmem:[#allocation8 + $0x158] sm:$0xff]
          %v547 = vld [vmem:[#allocation8 + $0x160] sm:$0xff]
          %v548 = vld [vmem:[#allocation8 + $0x168] sm:$0xff]
          %v549 = vld [vmem:[#allocation8 + $0x170] sm:$0xff]
          %v550 = vld [vmem:[#allocation8 + $0x178] sm:$0xff]
          %v551 = vld [vmem:[#allocation8 + $0x180] sm:$0xff]
          %v552 = vld [vmem:[#allocation8 + $0x188] sm:$0xff]
          %v553 = vld [vmem:[#allocation8 + $0x190] sm:$0xff]
          %v554 = vld [vmem:[#allocation8 + $0x198] sm:$0xff]
          %v555 = vld [vmem:[#allocation8 + $0x1a0] sm:$0xff]
          %v556 = vld [vmem:[#allocation8 + $0x1a8] sm:$0xff]
          %v557 = vld [vmem:[#allocation8 + $0x1b0] sm:$0xff]
          %v558 = vld [vmem:[#allocation8 + $0x1b8] sm:$0xff]
          %v559 = vld [vmem:[#allocation8 + $0x1c0] sm:$0xff]
          %v560 = vld [vmem:[#allocation8 + $0x1c8] sm:$0xff]
          %v561 = vld [vmem:[#allocation8 + $0x1d0] sm:$0xff]
          %v562 = vld [vmem:[#allocation8 + $0x1d8] sm:$0xff]
          %v563 = vld [vmem:[#allocation8 + $0x1e0] sm:$0xff]
          %v564 = vld [vmem:[#allocation8 + $0x1e8] sm:$0xff]
          %v565 = vld [vmem:[#allocation8 + $0x1f0] sm:$0xff]
          %v566 = vld [vmem:[#allocation8 + $0x1f8] sm:$0xff]
          %v567 = vld [vmem:[%s4] sm:$0xff]
          %v569 = vlaneseq
          %v570 = vshrl.u32 %v569, 7
          %v571 = vsub.s32 0, %v570
          %v572 = vrot.slane %v567, %v571
          %v573 = vlaneseq
          %v574 = vshrl.u32 %v573, 7
          %v575 = vsub.s32 1, %v574
          %v576 = vrot.slane %v567, %v575
          %v577 = vlaneseq
          %v578 = vshrl.u32 %v577, 7
          %v579 = vsub.s32 2, %v578
          %v580 = vrot.slane %v567, %v579
          %v581 = vlaneseq
          %v582 = vshrl.u32 %v581, 7
          %v583 = vsub.s32 3, %v582
          %v584 = vrot.slane %v567, %v583
          %v585 = vlaneseq
          %v586 = vshrl.u32 %v585, 7
          %v587 = vsub.s32 4, %v586
          %v588 = vrot.slane %v567, %v587
          %v589 = vlaneseq
          %v590 = vshrl.u32 %v589, 7
          %v591 = vsub.s32 5, %v590
          %v592 = vrot.slane %v567, %v591
          %v593 = vlaneseq
          %v594 = vshrl.u32 %v593, 7
          %v595 = vsub.s32 6, %v594
          %v596 = vrot.slane %v567, %v595
          %v597 = vlaneseq
          %v598 = vshrl.u32 %v597, 7
          %v599 = vsub.s32 7, %v598
          %v600 = vrot.slane %v567, %v599
          %v673 = vunpack.c.l.b16 %v503
          %v674 = vunpack.c.h.b16 %v503
          %v675 = vunpack.c.l.b16 %v504
          %v676 = vunpack.c.h.b16 %v504
          %v677 = vunpack.c.l.b16 %v505
          %v678 = vunpack.c.h.b16 %v505
          %v679 = vunpack.c.l.b16 %v506
          %v680 = vunpack.c.h.b16 %v506
          %v681 = vunpack.c.l.b16 %v507
          %v682 = vunpack.c.h.b16 %v507
          %v683 = vunpack.c.l.b16 %v508
          %v684 = vunpack.c.h.b16 %v508
          %v685 = vunpack.c.l.b16 %v509
          %v686 = vunpack.c.h.b16 %v509
          %v687 = vunpack.c.l.b16 %v510
          %v688 = vunpack.c.h.b16 %v510
          %v689 = vunpack.c.l.b16 %v511
          %v690 = vunpack.c.h.b16 %v511
          %v691 = vunpack.c.l.b16 %v512
          %v692 = vunpack.c.h.b16 %v512
          %v693 = vunpack.c.l.b16 %v513
          %v694 = vunpack.c.h.b16 %v513
          %v695 = vunpack.c.l.b16 %v514
          %v696 = vunpack.c.h.b16 %v514
          %v697 = vunpack.c.l.b16 %v515
          %v698 = vunpack.c.h.b16 %v515
          %v699 = vunpack.c.l.b16 %v516
          %v700 = vunpack.c.h.b16 %v516
          %v701 = vunpack.c.l.b16 %v517
          %v702 = vunpack.c.h.b16 %v517
          %v703 = vunpack.c.l.b16 %v518
          %v704 = vunpack.c.h.b16 %v518
          %v705 = vunpack.c.l.b16 %v519
          %v706 = vunpack.c.h.b16 %v519
          %v707 = vunpack.c.l.b16 %v520
          %v708 = vunpack.c.h.b16 %v520
          %v709 = vunpack.c.l.b16 %v521
          %v710 = vunpack.c.h.b16 %v521
          %v711 = vunpack.c.l.b16 %v522
          %v712 = vunpack.c.h.b16 %v522
          %v713 = vunpack.c.l.b16 %v523
          %v714 = vunpack.c.h.b16 %v523
          %v715 = vunpack.c.l.b16 %v524
          %v716 = vunpack.c.h.b16 %v524
          %v717 = vunpack.c.l.b16 %v525
          %v718 = vunpack.c.h.b16 %v525
          %v719 = vunpack.c.l.b16 %v526
          %v720 = vunpack.c.h.b16 %v526
          %v721 = vunpack.c.l.b16 %v527
          %v722 = vunpack.c.h.b16 %v527
          %v723 = vunpack.c.l.b16 %v528
          %v724 = vunpack.c.h.b16 %v528
          %v725 = vunpack.c.l.b16 %v529
          %v726 = vunpack.c.h.b16 %v529
          %v727 = vunpack.c.l.b16 %v530
          %v728 = vunpack.c.h.b16 %v530
          %v729 = vunpack.c.l.b16 %v531
          %v730 = vunpack.c.h.b16 %v531
          %v731 = vunpack.c.l.b16 %v532
          %v732 = vunpack.c.h.b16 %v532
          %v733 = vunpack.c.l.b16 %v533
          %v734 = vunpack.c.h.b16 %v533
          %v735 = vunpack.c.l.b16 %v534
          %v736 = vunpack.c.h.b16 %v534
          %v737 = vunpack.c.l.b16 %v535
          %v738 = vunpack.c.h.b16 %v535
          %v739 = vunpack.c.l.b16 %v536
          %v740 = vunpack.c.h.b16 %v536
          %v741 = vunpack.c.l.b16 %v537
          %v742 = vunpack.c.h.b16 %v537
          %v743 = vunpack.c.l.b16 %v538
          %v744 = vunpack.c.h.b16 %v538
          %v745 = vunpack.c.l.b16 %v539
          %v746 = vunpack.c.h.b16 %v539
          %v747 = vunpack.c.l.b16 %v540
          %v748 = vunpack.c.h.b16 %v540
          %v749 = vunpack.c.l.b16 %v541
          %v750 = vunpack.c.h.b16 %v541
          %v751 = vunpack.c.l.b16 %v542
          %v752 = vunpack.c.h.b16 %v542
          %v753 = vunpack.c.l.b16 %v543
          %v754 = vunpack.c.h.b16 %v543
          %v755 = vunpack.c.l.b16 %v544
          %v756 = vunpack.c.h.b16 %v544
          %v757 = vunpack.c.l.b16 %v545
          %v758 = vunpack.c.h.b16 %v545
          %v759 = vunpack.c.l.b16 %v546
          %v760 = vunpack.c.h.b16 %v546
          %v761 = vunpack.c.l.b16 %v547
          %v762 = vunpack.c.h.b16 %v547
          %v763 = vunpack.c.l.b16 %v548
          %v764 = vunpack.c.h.b16 %v548
          %v765 = vunpack.c.l.b16 %v549
          %v766 = vunpack.c.h.b16 %v549
          %v767 = vunpack.c.l.b16 %v550
          %v768 = vunpack.c.h.b16 %v550
          %v769 = vunpack.c.l.b16 %v551
          %v770 = vunpack.c.h.b16 %v551
          %v771 = vunpack.c.l.b16 %v552
          %v772 = vunpack.c.h.b16 %v552
          %v773 = vunpack.c.l.b16 %v553
          %v774 = vunpack.c.h.b16 %v553
          %v775 = vunpack.c.l.b16 %v554
          %v776 = vunpack.c.h.b16 %v554
          %v777 = vunpack.c.l.b16 %v555
          %v778 = vunpack.c.h.b16 %v555
          %v779 = vunpack.c.l.b16 %v556
          %v780 = vunpack.c.h.b16 %v556
          %v781 = vunpack.c.l.b16 %v557
          %v782 = vunpack.c.h.b16 %v557
          %v783 = vunpack.c.l.b16 %v558
          %v784 = vunpack.c.h.b16 %v558
          %v785 = vunpack.c.l.b16 %v559
          %v786 = vunpack.c.h.b16 %v559
          %v787 = vunpack.c.l.b16 %v560
          %v788 = vunpack.c.h.b16 %v560
          %v789 = vunpack.c.l.b16 %v561
          %v790 = vunpack.c.h.b16 %v561
          %v791 = vunpack.c.l.b16 %v562
          %v792 = vunpack.c.h.b16 %v562
          %v793 = vunpack.c.l.b16 %v563
          %v794 = vunpack.c.h.b16 %v563
          %v795 = vunpack.c.l.b16 %v564
          %v796 = vunpack.c.h.b16 %v564
          %v797 = vunpack.c.l.b16 %v565
          %v798 = vunpack.c.h.b16 %v565
          %v799 = vunpack.c.l.b16 %v566
          %v800 = vunpack.c.h.b16 %v566
          %v801 = vpack.c.b16 %v681, %v673
          %v802 = vpack.c.b16 %v682, %v674
          %v803 = vpack.c.b16 %v683, %v675
          %v804 = vpack.c.b16 %v684, %v676
          %v805 = vpack.c.b16 %v685, %v677
          %v806 = vpack.c.b16 %v686, %v678
          %v807 = vpack.c.b16 %v687, %v679
          %v808 = vpack.c.b16 %v688, %v680
          %v809 = vpack.c.b16 %v697, %v689
          %v810 = vpack.c.b16 %v698, %v690
          %v811 = vpack.c.b16 %v699, %v691
          %v812 = vpack.c.b16 %v700, %v692
          %v813 = vpack.c.b16 %v701, %v693
          %v814 = vpack.c.b16 %v702, %v694
          %v815 = vpack.c.b16 %v703, %v695
          %v816 = vpack.c.b16 %v704, %v696
          %v817 = vpack.c.b16 %v713, %v705
          %v818 = vpack.c.b16 %v714, %v706
          %v819 = vpack.c.b16 %v715, %v707
          %v820 = vpack.c.b16 %v716, %v708
          %v821 = vpack.c.b16 %v717, %v709
          %v822 = vpack.c.b16 %v718, %v710
          %v823 = vpack.c.b16 %v719, %v711
          %v824 = vpack.c.b16 %v720, %v712
          %v825 = vpack.c.b16 %v729, %v721
          %v826 = vpack.c.b16 %v730, %v722
          %v827 = vpack.c.b16 %v731, %v723
          %v828 = vpack.c.b16 %v732, %v724
          %v829 = vpack.c.b16 %v733, %v725
          %v830 = vpack.c.b16 %v734, %v726
          %v831 = vpack.c.b16 %v735, %v727
          %v832 = vpack.c.b16 %v736, %v728
          %v833 = vpack.c.b16 %v745, %v737
          %v834 = vpack.c.b16 %v746, %v738
          %v835 = vpack.c.b16 %v747, %v739
          %v836 = vpack.c.b16 %v748, %v740
          %v837 = vpack.c.b16 %v749, %v741
          %v838 = vpack.c.b16 %v750, %v742
          %v839 = vpack.c.b16 %v751, %v743
          %v840 = vpack.c.b16 %v752, %v744
          %v841 = vpack.c.b16 %v761, %v753
          %v842 = vpack.c.b16 %v762, %v754
          %v843 = vpack.c.b16 %v763, %v755
          %v844 = vpack.c.b16 %v764, %v756
          %v845 = vpack.c.b16 %v765, %v757
          %v846 = vpack.c.b16 %v766, %v758
          %v847 = vpack.c.b16 %v767, %v759
          %v848 = vpack.c.b16 %v768, %v760
          %v849 = vpack.c.b16 %v777, %v769
          %v850 = vpack.c.b16 %v778, %v770
          %v851 = vpack.c.b16 %v779, %v771
          %v852 = vpack.c.b16 %v780, %v772
          %v853 = vpack.c.b16 %v781, %v773
          %v854 = vpack.c.b16 %v782, %v774
          %v855 = vpack.c.b16 %v783, %v775
          %v856 = vpack.c.b16 %v784, %v776
          %v857 = vpack.c.b16 %v793, %v785
          %v858 = vpack.c.b16 %v794, %v786
          %v859 = vpack.c.b16 %v795, %v787
          %v860 = vpack.c.b16 %v796, %v788
          %v861 = vpack.c.b16 %v797, %v789
          %v862 = vpack.c.b16 %v798, %v790
          %v863 = vpack.c.b16 %v799, %v791
          %v864 = vpack.c.b16 %v800, %v792
          %929 = vmatprep.subr.bf16.mxu0 %v802
          %930 = vmatpush1.bf16.msra.mxu0 %v801
          %931 = vmatprep.subr.bf16.mxu0 %v810
          %932 = vmatpush1.bf16.msra.mxu0 %v809
          %933 = vmatprep.subr.bf16.mxu0 %v818
          %934 = vmatpush1.bf16.msra.mxu0 %v817
          %935 = vmatprep.subr.bf16.mxu0 %v826
          %936 = vmatpush1.bf16.msra.mxu0 %v825
          %937 = vmatprep.subr.bf16.mxu0 %v834
          %938 = vmatpush1.bf16.msra.mxu0 %v833
          %939 = vmatprep.subr.bf16.mxu0 %v842
          %940 = vmatpush1.bf16.msra.mxu0 %v841
          %941 = vmatprep.subr.bf16.mxu0 %v850
          %942 = vmatpush1.bf16.msra.mxu0 %v849
          %943 = vmatprep.subr.bf16.mxu0 %v858
          %944 = vmatpush1.bf16.msra.mxu0 %v857
          %945 = vmatprep.subr.bf16.mxu0 0
          %946 = vmatpush1.bf16.msra.mxu0 0
          %947 = vmatprep.subr.bf16.mxu0 0
          %948 = vmatpush1.bf16.msra.mxu0 0
          %949 = vmatprep.subr.bf16.mxu0 0
          %950 = vmatpush1.bf16.msra.mxu0 0
          %951 = vmatprep.subr.bf16.mxu0 0
          %952 = vmatpush1.bf16.msra.mxu0 0
          %953 = vmatprep.subr.bf16.mxu0 0
          %954 = vmatpush1.bf16.msra.mxu0 0
          %955 = vmatprep.subr.bf16.mxu0 0
          %956 = vmatpush1.bf16.msra.mxu0 0
          %957 = vmatprep.subr.bf16.mxu0 0
          %958 = vmatpush1.bf16.msra.mxu0 0
          %959 = vmatprep.subr.bf16.mxu0 0
          %960 = vmatpush1.bf16.msra.mxu0 0
          %961 = vmatprep.mubr.bf16.mxu0 0
          %962 = vmatmul.mubr.bf16.gmra.mrb[0].mxu0 %v502
          %v963 = vpop.f32.mrb[0].mxu0
          %v964 = vadd.f32 %v572, %v963
          %v965 = vpop.f32.mrb[0].mxu0
          %v966 = vadd.f32 %v576, %v965
          %v967 = vpop.f32.mrb[0].mxu0
          %v968 = vpop.f32.mrb[0].mxu0
          %969 = vdwg.mxu0
          %970 = vmatprep.subr.bf16.mxu0 %v804
          %971 = vmatpush1.bf16.msra.mxu0 %v803
          %972 = vmatprep.subr.bf16.mxu0 %v812
          %973 = vmatpush1.bf16.msra.mxu0 %v811
          %974 = vmatprep.subr.bf16.mxu0 %v820
          %975 = vmatpush1.bf16.msra.mxu0 %v819
          %976 = vmatprep.subr.bf16.mxu0 %v828
          %977 = vmatpush1.bf16.msra.mxu0 %v827
          %978 = vmatprep.subr.bf16.mxu0 %v836
          %979 = vmatpush1.bf16.msra.mxu0 %v835
          %980 = vmatprep.subr.bf16.mxu0 %v844
          %981 = vmatpush1.bf16.msra.mxu0 %v843
          %982 = vmatprep.subr.bf16.mxu0 %v852
          %983 = vmatpush1.bf16.msra.mxu0 %v851
          %984 = vmatprep.subr.bf16.mxu0 %v860
          %985 = vmatpush1.bf16.msra.mxu0 %v859
          %986 = vmatprep.subr.bf16.mxu0 0
          %987 = vmatpush1.bf16.msra.mxu0 0
          %988 = vmatprep.subr.bf16.mxu0 0
          %989 = vmatpush1.bf16.msra.mxu0 0
          %990 = vmatprep.subr.bf16.mxu0 0
          %991 = vmatpush1.bf16.msra.mxu0 0
          %992 = vmatprep.subr.bf16.mxu0 0
          %993 = vmatpush1.bf16.msra.mxu0 0
          %994 = vmatprep.subr.bf16.mxu0 0
          %995 = vmatpush1.bf16.msra.mxu0 0
          %996 = vmatprep.subr.bf16.mxu0 0
          %997 = vmatpush1.bf16.msra.mxu0 0
          %998 = vmatprep.subr.bf16.mxu0 0
          %999 = vmatpush1.bf16.msra.mxu0 0
          %1000 = vmatprep.subr.bf16.mxu0 0
          %1001 = vmatpush1.bf16.msra.mxu0 0
          %1002 = vmatprep.mubr.bf16.mxu0 0
          %1003 = vmatmul.mubr.bf16.gmra.mrb[0].mxu0 %v502
          %v1004 = vpop.f32.mrb[0].mxu0
          %v1005 = vadd.f32 %v580, %v1004
          %v1006 = vpop.f32.mrb[0].mxu0
          %v1007 = vadd.f32 %v584, %v1006
          %v1008 = vpop.f32.mrb[0].mxu0
          %v1009 = vpop.f32.mrb[0].mxu0
          %1010 = vdwg.mxu0
          %1011 = vmatprep.subr.bf16.mxu0 %v806
          %1012 = vmatpush1.bf16.msra.mxu0 %v805
          %1013 = vmatprep.subr.bf16.mxu0 %v814
          %1014 = vmatpush1.bf16.msra.mxu0 %v813
          %1015 = vmatprep.subr.bf16.mxu0 %v822
          %1016 = vmatpush1.bf16.msra.mxu0 %v821
          %1017 = vmatprep.subr.bf16.mxu0 %v830
          %1018 = vmatpush1.bf16.msra.mxu0 %v829
          %1019 = vmatprep.subr.bf16.mxu0 %v838
          %1020 = vmatpush1.bf16.msra.mxu0 %v837
          %1021 = vmatprep.subr.bf16.mxu0 %v846
          %1022 = vmatpush1.bf16.msra.mxu0 %v845
          %1023 = vmatprep.subr.bf16.mxu0 %v854
          %1024 = vmatpush1.bf16.msra.mxu0 %v853
          %1025 = vmatprep.subr.bf16.mxu0 %v862
          %1026 = vmatpush1.bf16.msra.mxu0 %v861
          %1027 = vmatprep.subr.bf16.mxu0 0
          %1028 = vmatpush1.bf16.msra.mxu0 0
          %1029 = vmatprep.subr.bf16.mxu0 0
          %1030 = vmatpush1.bf16.msra.mxu0 0
          %1031 = vmatprep.subr.bf16.mxu0 0
          %1032 = vmatpush1.bf16.msra.mxu0 0
          %1033 = vmatprep.subr.bf16.mxu0 0
          %1034 = vmatpush1.bf16.msra.mxu0 0
          %1035 = vmatprep.subr.bf16.mxu0 0
          %1036 = vmatpush1.bf16.msra.mxu0 0
          %1037 = vmatprep.subr.bf16.mxu0 0
          %1038 = vmatpush1.bf16.msra.mxu0 0
          %1039 = vmatprep.subr.bf16.mxu0 0
          %1040 = vmatpush1.bf16.msra.mxu0 0
          %1041 = vmatprep.subr.bf16.mxu0 0
          %1042 = vmatpush1.bf16.msra.mxu0 0
          %1043 = vmatprep.mubr.bf16.mxu0 0
          %1044 = vmatmul.mubr.bf16.gmra.mrb[0].mxu0 %v502
          %v1045 = vpop.f32.mrb[0].mxu0
          %v1046 = vadd.f32 %v588, %v1045
          %v1047 = vpop.f32.mrb[0].mxu0
          %v1048 = vadd.f32 %v592, %v1047
          %v1049 = vpop.f32.mrb[0].mxu0
          %v1050 = vpop.f32.mrb[0].mxu0
          %1051 = vdwg.mxu0
          %1052 = vmatprep.subr.bf16.mxu0 %v808
          %1053 = vmatpush1.bf16.msra.mxu0 %v807
          %1054 = vmatprep.subr.bf16.mxu0 %v816
          %1055 = vmatpush1.bf16.msra.mxu0 %v815
          %1056 = vmatprep.subr.bf16.mxu0 %v824
          %1057 = vmatpush1.bf16.msra.mxu0 %v823
          %1058 = vmatprep.subr.bf16.mxu0 %v832
          %1059 = vmatpush1.bf16.msra.mxu0 %v831
          %1060 = vmatprep.subr.bf16.mxu0 %v840
          %1061 = vmatpush1.bf16.msra.mxu0 %v839
          %1062 = vmatprep.subr.bf16.mxu0 %v848
          %1063 = vmatpush1.bf16.msra.mxu0 %v847
          %1064 = vmatprep.subr.bf16.mxu0 %v856
          %1065 = vmatpush1.bf16.msra.mxu0 %v855
          %1066 = vmatprep.subr.bf16.mxu0 %v864
          %1067 = vmatpush1.bf16.msra.mxu0 %v863
          %1068 = vmatprep.subr.bf16.mxu0 0
          %1069 = vmatpush1.bf16.msra.mxu0 0
          %1070 = vmatprep.subr.bf16.mxu0 0
          %1071 = vmatpush1.bf16.msra.mxu0 0
          %1072 = vmatprep.subr.bf16.mxu0 0
          %1073 = vmatpush1.bf16.msra.mxu0 0
          %1074 = vmatprep.subr.bf16.mxu0 0
          %1075 = vmatpush1.bf16.msra.mxu0 0
          %1076 = vmatprep.subr.bf16.mxu0 0
          %1077 = vmatpush1.bf16.msra.mxu0 0
          %1078 = vmatprep.subr.bf16.mxu0 0
          %1079 = vmatpush1.bf16.msra.mxu0 0
          %1080 = vmatprep.subr.bf16.mxu0 0
          %1081 = vmatpush1.bf16.msra.mxu0 0
          %1082 = vmatprep.subr.bf16.mxu0 0
          %1083 = vmatpush1.bf16.msra.mxu0 0
          %1084 = vmatprep.mubr.bf16.mxu0 0
          %1085 = vmatmul.mubr.bf16.gmra.mrb[0].mxu0 %v502
          %v1086 = vpop.f32.mrb[0].mxu0
          %v1087 = vadd.f32 %v596, %v1086
          %v1088 = vpop.f32.mrb[0].mxu0
          %v1089 = vadd.f32 %v600, %v1088
          %v1090 = vpop.f32.mrb[0].mxu0
          %v1091 = vpop.f32.mrb[0].mxu0
          %1092 = vdwg.mxu0
          %v1093 = vmax.f32 %v964, 0.0
          %v1094 = vmax.f32 %v966, 0.0
          %v1095 = vmax.f32 %v1005, 0.0
          %v1096 = vmax.f32 %v1007, 0.0
          %v1097 = vmax.f32 %v1046, 0.0
          %v1098 = vmax.f32 %v1048, 0.0
          %v1099 = vmax.f32 %v1087, 0.0
          %v1100 = vmax.f32 %v1089, 0.0
          %v1101 = vld [vmem:[%s5] sm:$0xff]
          %v1103 = vlaneseq
          %v1104 = vshrl.u32 %v1103, 7
          %v1105 = vsub.s32 0, %v1104
          %v1106 = vrot.slane %v1101, %v1105
          %v1107 = vlaneseq
          %v1108 = vshrl.u32 %v1107, 7
          %v1109 = vsub.s32 1, %v1108
          %v1110 = vrot.slane %v1101, %v1109
          %v1111 = vlaneseq
          %v1112 = vshrl.u32 %v1111, 7
          %v1113 = vsub.s32 2, %v1112
          %v1114 = vrot.slane %v1101, %v1113
          %v1115 = vlaneseq
          %v1116 = vshrl.u32 %v1115, 7
          %v1117 = vsub.s32 3, %v1116
          %v1118 = vrot.slane %v1101, %v1117
          %v1119 = vlaneseq
          %v1120 = vshrl.u32 %v1119, 7
          %v1121 = vsub.s32 4, %v1120
          %v1122 = vrot.slane %v1101, %v1121
          %v1123 = vlaneseq
          %v1124 = vshrl.u32 %v1123, 7
          %v1125 = vsub.s32 5, %v1124
          %v1126 = vrot.slane %v1101, %v1125
          %v1127 = vlaneseq
          %v1128 = vshrl.u32 %v1127, 7
          %v1129 = vsub.s32 6, %v1128
          %v1130 = vrot.slane %v1101, %v1129
          %v1131 = vlaneseq
          %v1132 = vshrl.u32 %v1131, 7
          %v1133 = vsub.s32 7, %v1132
          %v1134 = vrot.slane %v1101, %v1133
          %v1143 = vmul.f32 %v1093, %v1106
          %v1144 = vmul.f32 %v1094, %v1110
          %v1145 = vmul.f32 %v1095, %v1114
          %v1146 = vmul.f32 %v1096, %v1118
          %v1147 = vmul.f32 %v1097, %v1122
          %v1148 = vmul.f32 %v1098, %v1126
          %v1149 = vmul.f32 %v1099, %v1130
          %v1150 = vmul.f32 %v1100, %v1134
          %v1151 = vcombine.low %v1143, %v1145
          %v1153 = vunpack.c.l.s4 1983009808
          %v1154 = vunpack.c.0.s8 %v1153
          %v1155 = vlaneseq
          %v1156 = vshrl.u32 %v1155, 7
          %v1157 = vsub.s32 %v1154, %v1156
          %v1158 = vrot.slane %v1151, %v1157
          %v1159 = vcombine.low %v1144, %v1146
          %v1161 = vunpack.c.l.s4 1983009808
          %v1162 = vunpack.c.0.s8 %v1161
          %v1163 = vlaneseq
          %v1164 = vshrl.u32 %v1163, 7
          %v1165 = vsub.s32 %v1162, %v1164
          %v1166 = vrot.slane %v1159, %v1165
          %v1167 = vcombine.low %v1147, %v1149
          %v1169 = vunpack.c.l.s4 1983009808
          %v1170 = vunpack.c.0.s8 %v1169
          %v1171 = vlaneseq
          %v1172 = vshrl.u32 %v1171, 7
          %v1173 = vsub.s32 %v1170, %v1172
          %v1174 = vrot.slane %v1167, %v1173
          %v1175 = vcombine.low %v1148, %v1150
          %v1177 = vunpack.c.l.s4 1983009808
          %v1178 = vunpack.c.0.s8 %v1177
          %v1179 = vlaneseq
          %v1180 = vshrl.u32 %v1179, 7
          %v1181 = vsub.s32 %v1178, %v1180
          %v1182 = vrot.slane %v1175, %v1181
          %v1183 = vcombine.low %v1158, %v1166
          %v1185 = vunpack.c.l.s4 1934713408
          %v1186 = vunpack.c.0.s8 %v1185
          %v1187 = vlaneseq
          %v1188 = vshrl.u32 %v1187, 7
          %v1189 = vsub.s32 %v1186, %v1188
          %v1190 = vrot.slane %v1183, %v1189
          %v1191 = vcombine.low %v1174, %v1182
          %v1193 = vunpack.c.l.s4 1934713408
          %v1194 = vunpack.c.0.s8 %v1193
          %v1195 = vlaneseq
          %v1196 = vshrl.u32 %v1195, 7
          %v1197 = vsub.s32 %v1194, %v1196
          %v1198 = vrot.slane %v1191, %v1197
          %v1199 = vcombine.low %v1190, %v1198
          %v1200 = vcombine.high %v1190, %v1198
          %1201 = vadd.xlane.f32.xlu0 %v1199
          %v1202 = vpop.xlane.xlu0 %1201
          %1203 = vadd.xlane.f32.xlu0 %v1200
          %v1204 = vpop.xlane.xlu0 %1203
          %v1205 = vlaneseq
          %v1206 = vshrl.u32 %v1205, 7
          %v1207 = vlaneseq
          %v1208 = vand.u32 %v1207, 127
          %vm1209 = vcmp.eq.s32.totalorder %v1206, %v1208
          %v1210 = vsel %vm1209, 1, 0
          %v1211 = vcvt.s32.f32 %v1210
          %v1212 = vld [vmem:[%s6] sm:$0x1]
          %v1214 = vlaneseq
          %v1215 = vshrl.u32 %v1214, 7
          %v1216 = vsub.s32 0, %v1215
          %v1217 = vrot.slane %v1212, %v1216
          %v1221 = vlaneseq
          %v1222 = vshrl.u32 %v1221, 7
          %v1223 = vsub.s32 %v1208, %v1222
          %v1224 = vrot.slane %v1202, %v1223
          %v1225 = vlaneseq
          %v1226 = vshrl.u32 %v1225, 7
          %v1227 = vsub.s32 %v1208, %v1226
          %v1228 = vrot.slane %v1204, %v1227
          %v1229 = vsel %vm491, %v1228, %v1224
          %vm1230 = vcmask 64512
          %v1231 = vsel %vm1230, %v1229, 0
          %1233 = vmatprep.subr.mxu0 0.0
          %1234 = vmatpush1.msra.mxu0 %v1211
          %1235 = vmatprep.subr.mxu0 0.0
          %1236 = vmatpush1.msra.mxu0 0.0
          %1237 = vmatprep.subr.mxu0 0.0
          %1238 = vmatpush1.msra.mxu0 0.0
          %1239 = vmatprep.subr.mxu0 0.0
          %1240 = vmatpush1.msra.mxu0 0.0
          %1241 = vmatprep.subr.mxu0 0.0
          %1242 = vmatpush1.msra.mxu0 0.0
          %1243 = vmatprep.subr.mxu0 0.0
          %1244 = vmatpush1.msra.mxu0 0.0
          %1245 = vmatprep.subr.mxu0 0.0
          %1246 = vmatpush1.msra.mxu0 0.0
          %1247 = vmatprep.subr.mxu0 0.0
          %1248 = vmatpush1.msra.mxu0 0.0
          %1249 = vmatprep.subr.mxu0 0.0
          %1250 = vmatpush1.msra.mxu0 0.0
          %1251 = vmatprep.subr.mxu0 0.0
          %1252 = vmatpush1.msra.mxu0 0.0
          %1253 = vmatprep.subr.mxu0 0.0
          %1254 = vmatpush1.msra.mxu0 0.0
          %1255 = vmatprep.subr.mxu0 0.0
          %1256 = vmatpush1.msra.mxu0 0.0
          %1257 = vmatprep.subr.mxu0 0.0
          %1258 = vmatpush1.msra.mxu0 0.0
          %1259 = vmatprep.subr.mxu0 0.0
          %1260 = vmatpush1.msra.mxu0 0.0
          %1261 = vmatprep.subr.mxu0 0.0
          %1262 = vmatpush1.msra.mxu0 0.0
          %1263 = vmatprep.subr.mxu0 0.0
          %1264 = vmatpush1.msra.mxu0 0.0
          %1265 = vmatprep.subr.mxu0 0.0
          %1266 = vmatpush1.msra.mxu0 0.0
          %1267 = vmatprep.subr.mxu0 0.0
          %1268 = vmatpush1.msra.mxu0 0.0
          %1269 = vmatprep.subr.mxu0 0.0
          %1270 = vmatpush1.msra.mxu0 0.0
          %1271 = vmatprep.subr.mxu0 0.0
          %1272 = vmatpush1.msra.mxu0 0.0
          %1273 = vmatprep.subr.mxu0 0.0
          %1274 = vmatpush1.msra.mxu0 0.0
          %1275 = vmatprep.subr.mxu0 0.0
          %1276 = vmatpush1.msra.mxu0 0.0
          %1277 = vmatprep.subr.mxu0 0.0
          %1278 = vmatpush1.msra.mxu0 0.0
          %1279 = vmatprep.subr.mxu0 0.0
          %1280 = vmatpush1.msra.mxu0 0.0
          %1281 = vmatprep.subr.mxu0 0.0
          %1282 = vmatpush1.msra.mxu0 0.0
          %1283 = vmatprep.subr.mxu0 0.0
          %1284 = vmatpush1.msra.mxu0 0.0
          %1285 = vmatprep.subr.mxu0 0.0
          %1286 = vmatpush1.msra.mxu0 0.0
          %1287 = vmatprep.subr.mxu0 0.0
          %1288 = vmatpush1.msra.mxu0 0.0
          %1289 = vmatprep.subr.mxu0 0.0
          %1290 = vmatpush1.msra.mxu0 0.0
          %1291 = vmatprep.subr.mxu0 0.0
          %1292 = vmatpush1.msra.mxu0 0.0
          %1293 = vmatprep.subr.mxu0 0.0
          %1294 = vmatpush1.msra.mxu0 0.0
          %1295 = vmatprep.subr.mxu0 0.0
          %1296 = vmatpush1.msra.mxu0 0.0
          %1297 = vmatprep.mubr.f32.mxu0 0.0
          %1298 = vmatmul.mubr.f32.gmra.mrb[0].mxu0 %v1231
          %v1299 = vpop.f32.mrb[0].mxu0
          %v1300 = vadd.f32 %v1217, %v1299
          %v1301 = vpop.f32.mrb[0].mxu0
          %1302 = vdwg.mxu0
          %1303 = vst [vmem:[#allocation9] sm:$0x3] %v1300
        $region68: #{tpu_custom_call.1} parent=47 // pred_fallthru
          _
        // Predicated region
        $region69: #{tpu_custom_call.1} parent=47 // pred_check
          %p1304 = pneg %p207
        $region70: #{tpu_custom_call.1} parent=47 // pred_check_branch
          %1306 = sbr.rel (%p1304) target = $region72
        $region71: #{tpu_custom_call.1} parent=47 // pred_region
          %s1308 = ssub.s32 32, 32
          %1309 = vsyncadd [#allocation5], %s1308
          %s1310 = smul.addr %s27, 32
          %s1311 = scalar_lea.hbm %s7, %s1310
          %s1313 = sshll.u32 [#allocation9], 4
          %s1314 = int_to_ptr.vmem [resolvable:$true] %s1313
          %1316 = dma.vmem_to_hbm [thread:$0]  %s1314, 32, %s1311, [#allocation5]
        $region72: #{tpu_custom_call.1} parent=47 // pred_fallthru
          _
        // Predicated region
        $region73: #{tpu_custom_call.1} parent=47 // pred_check
          %p1317 = pneg %p207
        $region74: #{tpu_custom_call.1} parent=47 // pred_check_branch
          %1319 = sbr.rel (%p1317) target = $region76
        $region75: #{tpu_custom_call.1} parent=47 // pred_region
          %1320 = dma.done [#allocation5], 32
        $region76: #{tpu_custom_call.1} parent=47 // pred_fallthru
          _
      $region48: #{tpu_custom_call.1} parent=5 // pred_fallthru
        _
      %p1321 = scmp.le.s32.totalorder 2, %s18
      // Predicated region
      $region77: #{tpu_custom_call.1} parent=5 // pred_check
        %p1322 = pneg %p1321
      $region78: #{tpu_custom_call.1} parent=5 // pred_check_branch
        %1324 = sbr.rel (%p1322) target = $region80
      $region79: #{tpu_custom_call.1} parent=5 // pred_region
        %s1325 = ssub.s32 %s18, 2
      $region80: #{tpu_custom_call.1} parent=5 // pred_fallthru
        _
    $region6: #{tpu_custom_call.1} parent=1 // loop_footer
      %s22 = sadd.s32 1, %s18
    $region7: #{tpu_custom_call.1} parent=1 // loop_footer_branch
      %17 = sbr.rel target = $region3
    $region8: #{tpu_custom_call.1} parent=1 // loop_exit
      _
    %1326 = vsyncpa [#allocation4], 1
    %s1327 = scalar_lea.sflag [#allocation4], 1
    %1328 = vsyncpa %s1327, 1
    %1329 = vsyncpa [#allocation7], 1
    %1330 = vsyncpa [#allocation5], 1
    %s1331 = scalar_lea.sflag [#allocation5], 1
    %1332 = vsyncpa %s1331, 1

</llo_original>
